<compile_context>
chip_gen: v6e
topology: v6e:2x2x1
jax: 0.10.0
libtpu: 0.0.40
codegen_flags: <defaults>
</compile_context>

<pallas_src>
import functools
import math

import jax
import jax.numpy as jnp
from jax.experimental import pallas as pl
from jax.experimental.pallas import tpu as pltpu

CALIB_SCALE = 1.1  # unused in non-calib forward, kept for parity with the module
BIT_WIDTH = 8
QN = float(-(2 ** (BIT_WIDTH - 1)))      # -128.0
QP = float(2 ** (BIT_WIDTH - 1) - 1)     #  127.0

_MIB = 1024 * 1024
_MULTIBLOCK_THRESHOLD_BYTES = 2 * _MIB   # below this a single block is fine


def _chip_budget():
    """(target_block_bytes, vmem_limit_bytes) derived from the chip's VMEM size."""
    try:
        vmem = pltpu.get_tpu_info().vmem_capacity_bytes
    except Exception:  # interpret mode / older jax: be conservative
        vmem = 64 * _MIB
    if vmem >= 100 * _MIB:            # v5e / v6e (128 MiB VMEM)
        return 8 * _MIB, 96 * _MIB
    return 4 * _MIB, 48 * _MIB        # v7x (64 MiB VMEM): never grow past ~4 MiB blocks


def _input_quant_kernel(x_ref, p_ref, o_ref):
    # x_ref: (TM, Cf) lane-dense tile (Cf % 128 == 0, or equal to full array dims)
    # p_ref: (3, Cf) f32 fused params: row 0 = 1/act_scale, row 1 = act_scale,
    #        row 2 = act_offset (each channel vector tiled k times).
    x = x_ref[...].astype(jnp.float32)       # f32 compute even for bf16 input
    inv_s = p_ref[0:1, :]
    scale = p_ref[1:2, :]
    offset = p_ref[2:3, :]

    x_scaled = (x - offset) * inv_s          # multiply by exact reciprocal
    x_clamped = jnp.clip(x_scaled, QN, QP)
    x_q = jnp.round(x_clamped)               # half-to-even, matches torch.round_
    o_ref[...] = (x_q * scale + offset).astype(o_ref.dtype)
    # TODO(synk): a v7x-only bf16-compute variant of the (sub,mul,clip,round) stage
    # could relieve the VALU-bound bf16 path; needs a bundle dump to justify.


def _pick_tile_rows(mf, cf, itemsize, pack, tile_rows, target_block_bytes):
    """Static (Python-int) tile-row selection."""
    if tile_rows is not None:
        # Round the caller's choice down to the sublane pack so *every* block
        # (not just the edge) stays sublane-aligned.
        tile_rows = max(pack, (tile_rows // pack) * pack)
        return min(tile_rows, mf)

    eff_itemsize = max(itemsize, 4)          # bound the f32 compute temporaries too
    total_bytes = mf * cf * eff_itemsize
    if total_bytes <= _MULTIBLOCK_THRESHOLD_BYTES or mf <= pack:
        return mf                            # single full-extent block

    # >= 2 blocks and an even grid so the "parallel" axis splits evenly across
    # v7x's two TensorCores; ~target_block_bytes per block otherwise.
    nblk = max(2, pl.cdiv(total_bytes, target_block_bytes))
    nblk += nblk % 2
    tm = pl.cdiv(mf, nblk)
    tm = max(pack, pl.cdiv(tm, pack) * pack)
    tm = min(tm, mf)
    grid_n = pl.cdiv(mf, tm)
    while grid_n > 1 and grid_n % 2 == 1 and tm > pack:
        tm -= pack
        grid_n = pl.cdiv(mf, tm)
    return tm


def _run_quant_2d(x2d, params, *, tile_rows, in_place):
    mf, cf = x2d.shape
    itemsize = jnp.dtype(x2d.dtype).itemsize
    pack = 8 * max(1, 4 // itemsize)                  # 8 f32, 16 bf16, 32 int8
    target_block_bytes, vmem_limit = _chip_budget()
    tm = _pick_tile_rows(mf, cf, itemsize, pack, tile_rows, target_block_bytes)
    grid = (pl.cdiv(mf, tm),)                         # partial edge block is masked

    cost = pl.CostEstimate(
        flops=8 * mf * cf,
        transcendentals=0,
        bytes_accessed=2 * mf * cf * itemsize + 3 * cf * 4,
    )

    return pl.pallas_call(
        _input_quant_kernel,
        out_shape=jax.ShapeDtypeStruct((mf, cf), x2d.dtype),
        grid_spec=pltpu.PrefetchScalarGridSpec(
            num_scalar_prefetch=0,
            grid=grid,
            in_specs=[
                pl.BlockSpec((tm, cf), lambda i: (i, 0)),
                pl.BlockSpec((3, cf), lambda i: (0, 0)),   # fused params, 1 DMA
            ],
            out_specs=pl.BlockSpec((tm, cf), lambda i: (i, 0)),
        ),
        compiler_params=pltpu.CompilerParams(
            dimension_semantics=("parallel",),
            vmem_limit_bytes=vmem_limit,
        ),
        cost_estimate=cost,
        # In-place fake-quant: avoids a separate full-tensor output allocation
        # when the caller donates x (otherwise XLA inserts a defensive copy).
        input_output_aliases={0: 0} if in_place else {},
    )(x2d, params)


@functools.partial(jax.jit, static_argnames=("tile_rows", "in_place"))
def input_quantizer_forward(x, act_scale, act_offset, *, tile_rows=None, in_place=False):
    """Fake-quantize x (channel-last) with per-channel scale/offset.

    NOTE: act_scale must be non-zero (a calibrated module); the PyTorch default
    init (zeros) would divide by zero there as well, so no clamp is applied.
    """
    orig_shape = x.shape
    C = orig_shape[-1]
    M = 1
    for d in orig_shape[:-1]:
        M *= d

    scale_f = act_scale.astype(jnp.float32)
    offset_f = act_offset.astype(jnp.float32)
    inv_scale_f = 1.0 / scale_f   # exact reciprocal (can differ from divide by 1 ulp)

    def jnp_quant(xv):
        xf = xv.astype(jnp.float32)
        xs = (xf - offset_f) * inv_scale_f
        xq = jnp.round(jnp.clip(xs, QN, QP))
        return (xq * scale_f + offset_f).astype(xv.dtype)

    # Lane-dense fold: view k consecutive rows as one row of k*C lanes so the
    # minor dim is a multiple of 128 (full-width vst instead of 25%-lane vst.msk).
    # Per-channel broadcast simply repeats every C lanes, so semantics are unchanged.
    k = 128 // math.gcd(C, 128)
    m_bulk = (M // k) * k
    rem = M - m_bulk

    x2d = x.reshape(M, C)

    if m_bulk == 0:                         # degenerate tiny tensor (< k rows)
        return jnp_quant(x2d).reshape(orig_shape)

    Cf = k * C
    params = jnp.stack(
        [jnp.tile(inv_scale_f, k), jnp.tile(scale_f, k), jnp.tile(offset_f, k)],
        axis=0,
    )                                        # (3, Cf) float32

    x_bulk_src = x2d if rem == 0 else x2d[:m_bulk]
    x_bulk = x_bulk_src.reshape(m_bulk // k, Cf)   # metadata-only reshape (contiguous)
    out_bulk = _run_quant_2d(x_bulk, params, tile_rows=tile_rows, in_place=in_place)

    if rem == 0:
        return out_bulk.reshape(orig_shape)

    # Epilogue for the < k leftover rows (O(k*C) elements) in plain jnp; the
    # concatenate copies the bulk once at the XLA level, still far cheaper than
    # pushing the whole tensor through a 25%-lane masked-store layout.
    out_rem = jnp_quant(x2d[m_bulk:])
    out_bulk = out_bulk.reshape(m_bulk, C)
    return jnp.concatenate([out_bulk, out_rem], axis=0).reshape(orig_shape)


def reference_forward(x, act_scale, act_offset):
    # Pure-JAX reference (same exact-reciprocal path as the kernel).
    xf = x.astype(jnp.float32)
    s = act_scale.astype(jnp.float32)
    o = act_offset.astype(jnp.float32)
    x_scaled = (xf - o) * (1.0 / s)
    x_clamped = jnp.clip(x_scaled, QN, QP)
    x_q = jnp.round(x_clamped)
    return (x_q * s + o).astype(x.dtype)


if __name__ == "__main__":
    key = jax.random.PRNGKey(0)
    kx, ks, ko, kx2, kx3, kx5 = jax.random.split(key, 6)

    in_channels = 32
    # Deterministic positive scales (the PyTorch zero-init would div-by-zero).
    act_scale = 0.05 + 0.1 * jax.random.uniform(ks, (in_channels,), dtype=jnp.float32)
    act_offset = 0.01 * jax.random.normal(ko, (in_channels,), dtype=jnp.float32)

    # 1) Small canonical shape (channel-last activations), lane-fold path.
    x1 = jax.random.normal(kx, (2, 8, in_channels), dtype=jnp.float32) * 3.0
    out1 = jax.block_until_ready(input_quantizer_forward(x1, act_scale, act_offset))
    ref1 = reference_forward(x1, act_scale, act_offset)
    assert out1.shape == x1.shape and out1.dtype == x1.dtype
    assert jnp.allclose(out1, ref1, atol=1e-5, rtol=1e-5), "mismatch (fold path)"

    # 2) M % k != 0: folded bulk through the kernel + tiny jnp epilogue (3 rows).
    x2 = jax.random.normal(kx2, (3, 37, in_channels), dtype=jnp.float32) * 2.0
    out2 = jax.block_until_ready(input_quantizer_forward(x2, act_scale, act_offset))
    ref2 = reference_forward(x2, act_scale, act_offset)
    assert jnp.allclose(out2, ref2, atol=1e-5, rtol=1e-5), "mismatch (bulk+epilogue)"

    # 3) User tile_rows -> multi-block grid with a partial (masked) final block.
    x3 = jax.random.normal(kx3, (4, 1000, in_channels), dtype=jnp.float32)
    out3 = jax.block_until_ready(
        input_quantizer_forward(x3, act_scale, act_offset, tile_rows=64))
    ref3 = reference_forward(x3, act_scale, act_offset)
    assert jnp.allclose(out3, ref3, atol=1e-5, rtol=1e-5), "mismatch (edge block)"

    # 4) bf16 activations: f32 compute inside the kernel, cast only at store.
    x4 = x1.astype(jnp.bfloat16)
    out4 = jax.block_until_ready(input_quantizer_forward(x4, act_scale, act_offset))
    ref4 = reference_forward(x4, act_scale, act_offset)
    assert out4.dtype == jnp.bfloat16
    assert jnp.allclose(out4.astype(jnp.float32), ref4.astype(jnp.float32),
                        atol=1e-2, rtol=1e-2), "mismatch (bf16)"

    # 5) Auto tile selection with an even multi-block grid (>2 MiB of data).
    x5 = jax.random.normal(kx5, (16, 2048, in_channels), dtype=jnp.float32)
    out5 = jax.block_until_ready(input_quantizer_forward(x5, act_scale, act_offset))
    ref5 = reference_forward(x5, act_scale, act_offset)
    assert jnp.allclose(out5, ref5, atol=1e-5, rtol=1e-5), "mismatch (auto grid)"

    # 6) In-place (aliased output) variant.
    out6 = jax.block_until_ready(
        input_quantizer_forward(x1, act_scale, act_offset, in_place=True))
    assert jnp.allclose(out6, ref1, atol=1e-5, rtol=1e-5), "mismatch (in_place)"

    # TODO(synk): calib_mode (stateful running-max update of act_scale), the
    # mx_format (quantize_mx_op microscaling library) branch, and the
    # incoh_proc_mode Hadamard preprocessing are stateful / external-library
    # paths and are not implemented in the kernel.
    print("KERNEL_OK")
</pallas_src>

<mosaic_0001>
module attributes {stable_mosaic.version = 11 : i64} {
  func.func @_input_quant_kernel(%arg0: i32, %arg1: memref<4x128xf32, #tpu.memory_space<vmem>>, %arg2: memref<3x128xf32, #tpu.memory_space<vmem>>, %arg3: memref<4x128xf32, #tpu.memory_space<vmem>>) attributes {dimension_semantics = [#tpu.dimension_semantics<parallel>], iteration_bounds = array<i64: 1>, scalar_prefetch = 0 : i64, scratch_operands = 0 : i64, tpu.core_type = #tpu.core_type<tc>, window_params = [{transform_indices = @transform_0, window_bounds = array<i64: 4, 128>}, {pipeline_mode = #tpu.pipeline_mode<synchronous>, transform_indices = @transform_1, window_bounds = array<i64: 3, 128>}, {transform_indices = @transform_2, window_bounds = array<i64: 4, 128>}]} {
    %c0 = arith.constant 0 : index
    %c0_0 = arith.constant 0 : index
    %0 = vector.load %arg1[%c0, %c0_0] : memref<4x128xf32, #tpu.memory_space<vmem>>, vector<4x128xf32>
    %c0_1 = arith.constant 0 : index
    %c0_2 = arith.constant 0 : index
    %1 = vector.load %arg2[%c0_1, %c0_2] : memref<3x128xf32, #tpu.memory_space<vmem>>, vector<1x128xf32>
    %c1 = arith.constant 1 : index
    %c0_3 = arith.constant 0 : index
    %2 = vector.load %arg2[%c1, %c0_3] : memref<3x128xf32, #tpu.memory_space<vmem>>, vector<1x128xf32>
    %c2 = arith.constant 2 : index
    %c0_4 = arith.constant 0 : index
    %3 = vector.load %arg2[%c2, %c0_4] : memref<3x128xf32, #tpu.memory_space<vmem>>, vector<1x128xf32>
    %4 = vector.broadcast %3 : vector<1x128xf32> to vector<4x128xf32>
    %5 = arith.subf %0, %4 : vector<4x128xf32>
    %6 = vector.broadcast %1 : vector<1x128xf32> to vector<4x128xf32>
    %7 = arith.mulf %5, %6 : vector<4x128xf32>
    %cst = arith.constant -1.280000e+02 : f32
    %cst_5 = arith.constant 1.270000e+02 : f32
    %8 = vector.broadcast %cst : f32 to vector<4x128xf32>
    %9 = arith.maximumf %8, %7 : vector<4x128xf32>
    %10 = vector.broadcast %cst_5 : f32 to vector<4x128xf32>
    %11 = arith.minimumf %10, %9 : vector<4x128xf32>
    %12 = math.roundeven %11 : vector<4x128xf32>
    %13 = vector.broadcast %2 : vector<1x128xf32> to vector<4x128xf32>
    %14 = arith.mulf %12, %13 : vector<4x128xf32>
    %15 = vector.broadcast %3 : vector<1x128xf32> to vector<4x128xf32>
    %16 = arith.addf %14, %15 : vector<4x128xf32>
    %c0_6 = arith.constant 0 : index
    %c0_7 = arith.constant 0 : index
    %17 = vector.load %arg3[%c0_6, %c0_7] : memref<4x128xf32, #tpu.memory_space<vmem>>, vector<4x128xf32>
    tpu.vector_store %arg3[%c0_6, %c0_7], %16 {strides = array<i32>} : memref<4x128xf32, #tpu.memory_space<vmem>>, vector<4x128xf32>,
    return
  }
  func.func @transform_0(%arg0: i32) -> (i32, i32) {
    %c0_i32 = arith.constant 0 : i32
    %c0_i32_0 = arith.constant 0 : i32
    return %arg0, %c0_i32 : i32, i32
  }
  func.func @transform_1(%arg0: i32) -> (i32, i32) {
    %c0_i32 = arith.constant 0 : i32
    %c0_i32_0 = arith.constant 0 : i32
    %c0_i32_1 = arith.constant 0 : i32
    return %c0_i32, %c0_i32_0 : i32, i32
  }
  func.func @transform_2(%arg0: i32) -> (i32, i32) {
    %c0_i32 = arith.constant 0 : i32
    %c0_i32_0 = arith.constant 0 : i32
    return %arg0, %c0_i32 : i32, i32
  }
}

</mosaic_0001>

<llo_original>
// kernel: tile.27
$region0: #{tile.27}
  %s0 = inlined_call_operand.vmem [shape: f32[4,32], index: 0, kind: input, shape index: {}]
  %s1 = inlined_call_operand.vmem [shape: f32[1,128], index: 1, kind: output, shape index: {}]
  $region1: #{tile.27} parent=0
    #allocation0 [shape = 'u8[4096]{0}', space=vmem, size = 0x1000, scoped, tag = 'scoped mem for output reshape']
    #allocation1 [shape = 'u8[4096]{0}', space=vmem, size = 0x1000, scoped, tag = 'scoped mem for input reshape']
    %s3 = sshll.u32 1, 4
    %s4 = ssub.s32 %s3, 1
    %v5 = vld [vmem:[%s0] sm:%s4]
    %6 = vst [vmem:[#allocation1] sm:%s4] %v5
    %v7 = vld [vmem:[#allocation1] sm:$0x1]
    %vm8 = vcmask 261120
    %9 = vst.msk [vmem:[#allocation0] sm:$0x1] %vm8, %v7
    %s10 = scalar_lea.vmem [#allocation1], 3
    %v11 = vld [vmem:[%s10] sm:$0x1]
    %12 = vrot.lane.b32.xlu0 %v11, 96
    %v13 = vpop.permute.xlu0 %12
    %vm14 = vcmask 1048320
    %15 = vst.msk [vmem:[#allocation0] sm:$0x1] %vm14, %v13
    %s16 = scalar_lea.vmem [#allocation1], 2
    %v17 = vld [vmem:[%s16] sm:$0x1]
    %18 = vrot.lane.b32.xlu0 %v17, 64
    %v19 = vpop.permute.xlu0 %18
    %vm20 = vcmask 785920
    %21 = vst.msk [vmem:[#allocation0] sm:$0x1] %vm20, %v19
    %s22 = scalar_lea.vmem [#allocation1], 1
    %v23 = vld [vmem:[%s22] sm:$0x1]
    %24 = vrot.lane.b32.xlu0 %v23, 32
    %v25 = vpop.permute.xlu0 %24
    %vm26 = vcmask 523520
    %27 = vst.msk [vmem:[#allocation0] sm:$0x1] %vm26, %v25
    %s29 = sshll.u32 1, 1
    %s30 = ssub.s32 %s29, 1
    %v32 = vld [vmem:[#allocation0] sm:%s30]
    %s33 = sshll.u32 1, 1
    %s34 = ssub.s32 %s33, 1
    %35 = vst [vmem:[%s1] sm:%s34] %v32

// kernel: tile.18
$region0: #{tile.18}
  #allocation0 [shape = 's32[1]{0}', space=sflag, size = 0x4, scoped, tag = 'scoped memory for tile.18']
  %s0 = inlined_call_operand.vmem [shape: f32[32], index: 0, kind: input, shape index: {}]
  %s1 = inlined_call_operand.vmem [shape: f32[4,32], index: 1, kind: output, shape index: {}]
  // Predicated region
  $region2: #{tile.18} parent=0 // pred_check
    _
  $region3: #{tile.18} parent=0 // pred_check_branch
    %3 = sbr.rel (0) target = $region5
  $region4: #{tile.18} parent=0 // pred_region
    _
  $region5: #{tile.18} parent=0 // pred_fallthru
    _
  %v4 = vld [vmem:[%s0] ss:$0 sm:$0xff]
  %5 = vst [vmem:[%s1] sm:$0xf] %v4

// kernel: input_quantizer_forward.1
$region0: #{input_quantizer_forward.1}
  #allocation0 [shape = 'u32[]', space=smem, size = 0x4, offset = 0x4, fixed_abs, tag = 'smem constant byte address 0x4 - core index']
  #allocation1 [shape = 'u32[144,128]{1,0:T(1,128)}', space=vmem, size = 0x12000, scoped, tag = 'internal scratch']
  %s0 = inlined_call_operand.vmem [shape: f32[4,128], index: 0, kind: input, shape index: {}]
  %s1 = inlined_call_operand.vmem [shape: f32[3,128], index: 1, kind: input, shape index: {}]
  %s2 = inlined_call_operand.vmem [shape: f32[4,128], index: 2, kind: output, shape index: {}]
  %s3 = sld [smem:[#allocation0]]
  $region18: #{input_quantizer_forward.1} parent=0
    _
  %s5 = ssub.s32 1, %s3
  %s6 = scalar_select 0, %s5, %s3
  // Predicated region
  $region2: #{input_quantizer_forward.1} parent=0 // pred_check
    _
  $region3: #{input_quantizer_forward.1} parent=0 // pred_check_branch
    %8 = sbr.rel (0) target = $region5
  $region4: #{input_quantizer_forward.1} parent=0 // pred_region
    _
  $region5: #{input_quantizer_forward.1} parent=0 // pred_fallthru
    _
  // Predicated region
  $region6: #{input_quantizer_forward.1} parent=0 // pred_check
    _
  $region7: #{input_quantizer_forward.1} parent=0 // pred_check_branch
    %10 = sbr.rel (0) target = $region9
  $region8: #{input_quantizer_forward.1} parent=0 // pred_region
    _
  $region9: #{input_quantizer_forward.1} parent=0 // pred_fallthru
    _
  %v11 = vld [vmem:[%s0] sm:$0xf]
  %v12 = vld [vmem:[%s1] sm:$0x1]
  %v13 = vld [vmem:[%s1 + $0x1] sm:$0x1]
  %v14 = vld [vmem:[%s1 + $0x2] sm:$0x1]
  %v15 = vlaneseq
  %v16 = vshrl.u32 %v15, 7
  %v17 = vsub.s32 0, %v16
  %v18 = vrot.slane %v14, %v17
  %v19 = vsub.f32 %v11, %v18
  %v20 = vlaneseq
  %v21 = vshrl.u32 %v20, 7
  %v22 = vsub.s32 0, %v21
  %v23 = vrot.slane %v12, %v22
  %v24 = vmul.f32 %v19, %v23
  %v25 = vmax.f32 %v24, -128.0
  %v26 = vmin.f32 %v25, 127.0
  %v27 = vround.ne.pseudo %v26
  %v28 = vlaneseq
  %v29 = vshrl.u32 %v28, 7
  %v30 = vsub.s32 0, %v29
  %v31 = vrot.slane %v13, %v30
  %v32 = vmul.f32 %v27, %v31
  %v33 = vadd.f32 %v32, %v18
  %34 = vst [vmem:[%s2] sm:$0xf] %v33
  // Predicated region
  $region10: #{input_quantizer_forward.1} parent=0 // pred_check
    _
  $region11: #{input_quantizer_forward.1} parent=0 // pred_check_branch
    %36 = sbr.rel (0) target = $region13
  $region12: #{input_quantizer_forward.1} parent=0 // pred_region
    _
  $region13: #{input_quantizer_forward.1} parent=0 // pred_fallthru
    _
  // Predicated region
  $region14: #{input_quantizer_forward.1} parent=0 // pred_check
    _
  $region15: #{input_quantizer_forward.1} parent=0 // pred_check_branch
    %38 = sbr.rel (0) target = $region17
  $region16: #{input_quantizer_forward.1} parent=0 // pred_region
    _
  $region17: #{input_quantizer_forward.1} parent=0 // pred_fallthru
    _

</llo_original>
